<compile_context>
chip_gen: v7x
topology: tpu7x:2x2x1
jax: 0.10.0
libtpu: 0.0.40
codegen_flags: <defaults>
</compile_context>

<pallas_src>
import math

import jax
import jax.numpy as jnp
from jax.experimental import pallas as pl
from jax.experimental.pallas import tpu as pltpu


def _cdiv(a: int, b: int) -> int:
    return -(-a // b)


def _pick_lanes(f128: int) -> int:
    """Largest multiple of 128 that divides f128 (itself a multiple of 128),
    capped at 2048, so the kernel's last dim is lane-dense with no padding."""
    for cand in range(2048, 127, -128):
        if f128 % cand == 0:
            return cand
    return 128


def _drop_path_kernel(scale_ref, x_ref, o_ref):
    # scale_ref: (TILE_ROWS, 1)       per-row scale (0 or 1/keep_prob), x.dtype
    # x_ref/o_ref: (TILE_ROWS, LANES) lane-dense slab of flattened features
    o_ref[...] = x_ref[...] * scale_ref[...]   # native-dtype broadcast multiply


def drop_path_pallas(x, rand, drop_prob: float = 0.0, training: bool = False):
    """Pallas DropPath.  `rand` holds B uniform [0,1) samples (the per-sample
    RNG draw is wrapper glue; the bandwidth-bound multiply runs in-kernel)."""
    if drop_prob is None or drop_prob == 0.0 or not training:
        return x
    keep_prob = 1.0 - float(drop_prob)

    B = x.shape[0]
    F = math.prod(x.shape[1:])
    dtype_bytes = x.dtype.itemsize

    # Per-sample Bernoulli(keep_prob) mask and scale, computed in float32 so
    # low-precision x dtypes don't quantize the keep probability; the scale is
    # then cast once to x.dtype so the kernel multiplies in the native dtype.
    rand_f32 = rand.astype(jnp.float32).reshape(B)
    mask = jnp.floor(keep_prob + rand_f32)                 # 0.0 or 1.0
    scale = mask * (1.0 / keep_prob)                       # (B,) float32

    ragged = (F % 128) != 0
    F_pad = _cdiv(F, 128) * 128 if ragged else F
    LANES = _pick_lanes(F_pad)
    R = F_pad // LANES                                     # rows per sample
    total_rows = B * R

    xf = x.reshape(B, F)
    if ragged:
        # TODO(synk): truly ragged feature counts fall back to pad + slice
        # (one extra HBM round trip); lane-aligned F (the common case) is
        # handled copy-free above.
        xf = jnp.pad(xf, ((0, 0), (0, F_pad - F)))
    x2 = xf.reshape(total_rows, LANES)                     # copy-free view

    # Per-row scale (tiny: total_rows * itemsize bytes).
    scale_rows = (
        jnp.broadcast_to(scale[:, None], (B, R))
        .reshape(total_rows, 1)
        .astype(x.dtype)
    )

    # ~4 MiB blocks: amortizes the ~0.35 us per-grid-step overhead on v6e/v7x
    # while keeping double-buffered live VMEM (~16 MiB) comfortable on v5e too.
    TARGET_BYTES = 4 * 1024 * 1024
    rows_target = max(8, (TARGET_BYTES // (LANES * dtype_bytes)) // 8 * 8)
    if total_rows >= 16:
        # Guarantee >= 2 grid steps (pipelining + v7x megacore sharding).
        half = max(8, (total_rows // 2) // 8 * 8)
        tile_rows = min(rows_target, half)
    else:
        tile_rows = total_rows          # tiny input: one block == full array
    n_blocks = _cdiv(total_rows, tile_rows)

    out2 = pl.pallas_call(
        _drop_path_kernel,
        out_shape=jax.ShapeDtypeStruct((total_rows, LANES), x.dtype),
        grid=(n_blocks,),
        in_specs=[
            pl.BlockSpec((tile_rows, 1), lambda r: (r, 0)),      # scale rows
            pl.BlockSpec((tile_rows, LANES), lambda r: (r, 0)),  # x slab
        ],
        out_specs=pl.BlockSpec((tile_rows, LANES), lambda r: (r, 0)),
        compiler_params=pltpu.CompilerParams(
            dimension_semantics=("parallel",),
            vmem_limit_bytes=32 * 1024 * 1024,
        ),
        cost_estimate=pl.CostEstimate(
            flops=B * F,
            transcendentals=0,
            bytes_accessed=2 * total_rows * LANES * dtype_bytes,
        ),
    )(scale_rows, x2)

    out = out2.reshape(B, F_pad)
    if ragged:
        out = out[:, :F]
    return out.reshape(x.shape)


class DropPath:
    """JAX/Pallas counterpart of the PyTorch DropPath module."""

    def __init__(self, drop_prob=None):
        self.drop_prob = drop_prob
        self.training = True

    def __call__(self, x, key):
        # TODO(synk): torch draws rand in x.dtype; we draw in f32 for accuracy.
        rand = jax.random.uniform(key, (x.shape[0],), dtype=jnp.float32)
        return drop_path_pallas(x, rand, self.drop_prob, self.training)


if __name__ == "__main__":
    key = jax.random.PRNGKey(0)
    kx, kr, kx2, kx3, kr3 = jax.random.split(key, 5)

    drop_prob = 0.3
    keep_prob = 1.0 - drop_prob

    # NCHW input, small shapes (F = 4*16*16 = 1024 -> lane-aligned, no pad)
    x = jax.random.normal(kx, (2, 4, 16, 16), dtype=jnp.float32)
    rand = jax.random.uniform(kr, (2, 1), dtype=jnp.float32)

    out = drop_path_pallas(x, rand, drop_prob=drop_prob, training=True)
    out = jax.block_until_ready(out)

    mask = jnp.floor(keep_prob + rand).reshape(2, 1, 1, 1)
    ref = x / keep_prob * mask
    assert out.shape == x.shape and out.dtype == x.dtype
    assert jnp.allclose(out, ref, rtol=1e-6, atol=1e-6), "mismatch vs reference"

    # Ragged feature count (F = 105) exercises the pad fallback path.
    x2 = jax.random.normal(kx2, (2, 3, 5, 7), dtype=jnp.float32)
    out2 = jax.block_until_ready(
        drop_path_pallas(x2, rand, drop_prob=drop_prob, training=True))
    ref2 = x2 / keep_prob * mask
    assert jnp.allclose(out2, ref2, rtol=1e-6, atol=1e-6), "ragged mismatch"

    # Larger batch exercises multi-sample blocks, multi-step grid and a
    # partial final block (20 rows, tile of 8 -> 3 grid steps).
    x3 = jax.random.normal(kx3, (20, 4, 8, 8), dtype=jnp.float32)
    rand3 = jax.random.uniform(kr3, (20,), dtype=jnp.float32)
    out3 = jax.block_until_ready(
        drop_path_pallas(x3, rand3, drop_prob=drop_prob, training=True))
    mask3 = jnp.floor(keep_prob + rand3).reshape(20, 1, 1, 1)
    ref3 = x3 / keep_prob * mask3
    assert jnp.allclose(out3, ref3, rtol=1e-6, atol=1e-6), "batched mismatch"

    # eval / drop_prob=0 path is identity
    out_eval = drop_path_pallas(x, rand, drop_prob=drop_prob, training=False)
    assert jnp.array_equal(out_eval, x)
    out_p0 = drop_path_pallas(x, rand, drop_prob=0.0, training=True)
    assert jnp.array_equal(out_p0, x)

    print("KERNEL_OK")
</pallas_src>

<mosaic_0001>
module attributes {stable_mosaic.version = 11 : i64} {
  func.func @_drop_path_kernel(%arg0: i32, %arg1: memref<2x1xf32, #tpu.memory_space<vmem>>, %arg2: memref<2x1024xf32, #tpu.memory_space<vmem>>, %arg3: memref<2x1024xf32, #tpu.memory_space<vmem>>) attributes {dimension_semantics = [#tpu.dimension_semantics<parallel>], iteration_bounds = array<i64: 1>, scalar_prefetch = 0 : i64, scratch_operands = 0 : i64, tpu.core_type = #tpu.core_type<tc>, window_params = [{transform_indices = @transform_0, window_bounds = array<i64: 2, 1>}, {transform_indices = @transform_1, window_bounds = array<i64: 2, 1024>}, {transform_indices = @transform_2, window_bounds = array<i64: 2, 1024>}]} {
    %c0 = arith.constant 0 : index
    %c0_0 = arith.constant 0 : index
    %0 = vector.load %arg2[%c0, %c0_0] : memref<2x1024xf32, #tpu.memory_space<vmem>>, vector<2x1024xf32>
    %c0_1 = arith.constant 0 : index
    %c0_2 = arith.constant 0 : index
    %1 = vector.load %arg1[%c0_1, %c0_2] : memref<2x1xf32, #tpu.memory_space<vmem>>, vector<2x1xf32>
    %2 = vector.broadcast %1 : vector<2x1xf32> to vector<2x1024xf32>
    %3 = arith.mulf %0, %2 : vector<2x1024xf32>
    %c0_3 = arith.constant 0 : index
    %c0_4 = arith.constant 0 : index
    %4 = vector.load %arg3[%c0_3, %c0_4] : memref<2x1024xf32, #tpu.memory_space<vmem>>, vector<2x1024xf32>
    tpu.vector_store %arg3[%c0_3, %c0_4], %3 {strides = array<i32>} : memref<2x1024xf32, #tpu.memory_space<vmem>>, vector<2x1024xf32>,
    return
  }
  func.func @transform_0(%arg0: i32) -> (i32, i32) {
    %c0_i32 = arith.constant 0 : i32
    %c0_i32_0 = arith.constant 0 : i32
    return %arg0, %c0_i32 : i32, i32
  }
  func.func @transform_1(%arg0: i32) -> (i32, i32) {
    %c0_i32 = arith.constant 0 : i32
    %c0_i32_0 = arith.constant 0 : i32
    return %arg0, %c0_i32 : i32, i32
  }
  func.func @transform_2(%arg0: i32) -> (i32, i32) {
    %c0_i32 = arith.constant 0 : i32
    %c0_i32_0 = arith.constant 0 : i32
    return %arg0, %c0_i32 : i32, i32
  }
}

</mosaic_0001>

<llo_original>
// kernel: tpu_custom_call.1
$region0: #{tpu_custom_call.1}
  #allocation0 [shape = 'u32[]', space=smem, size = 0x4, offset = 0x4, fixed_abs, tag = 'smem constant byte address 0x4 - core index']
  #allocation1 [shape = 'u32[144,128]{1,0:T(1,128)}', space=vmem, size = 0x12000, scoped, tag = 'internal scratch']
  %s0 = inlined_call_operand.vmem [shape: f32[2,1], index: 0, kind: input, shape index: {}]
  %s1 = inlined_call_operand.hbm [shape: f32[2,1024], index: 1, kind: input, shape index: {}]
  %s2 = inlined_call_operand.hbm [shape: f32[2,1024], index: 2, kind: output, shape index: {}]
  %s3 = sld [smem:[#allocation0]]
  $region22: #{tpu_custom_call.1} parent=0
    _
  %s5 = ssub.s32 1, %s3
  %s6 = scalar_select 0, %s5, %s3
  $region1: #{tpu_custom_call.1} parent=0
    #allocation2 [shape = 'u8[8192]{0}', space=vmem, size = 0x2000, scoped, tag = 'input window, operand 1, single buffered']
    #allocation3 [shape = 's32[1]{0}', space=sflag, size = 0x4, scoped, tag = 'scoped memory for tpu_custom_call.1']
    #allocation4 [shape = 's32[1]{0}', space=sflag, size = 0x4, scoped, tag = 'scoped memory for tpu_custom_call.1']
    #allocation5 [shape = 'u8[8192]{0}', space=vmem, size = 0x2000, scoped, tag = 'output window, operand 0, single buffered']
    %7 = vsyncpa [#allocation3], 0
    %8 = vsyncpa [#allocation4], 0
    // Predicated region
    $region2: #{tpu_custom_call.1} parent=1 // pred_check
      _
    $region3: #{tpu_custom_call.1} parent=1 // pred_check_branch
      %10 = sbr.rel (0) target = $region5
    $region4: #{tpu_custom_call.1} parent=1 // pred_region
      _
    $region5: #{tpu_custom_call.1} parent=1 // pred_fallthru
      _
    // Predicated region
    $region6: #{tpu_custom_call.1} parent=1 // pred_check
      _
    $region7: #{tpu_custom_call.1} parent=1 // pred_check_branch
      %12 = sbr.rel (0) target = $region9
    $region8: #{tpu_custom_call.1} parent=1 // pred_region
      %s14 = ssub.s32 256, 256
      %15 = vsyncadd [#allocation3], %s14
      %s17 = sshll.u32 [#allocation2], 4
      %s18 = int_to_ptr.vmem [resolvable:$true] %s17
      %20 = dma.hbm_to_vmem [thread:$0]  %s1, 256, %s18, [#allocation3]
    $region9: #{tpu_custom_call.1} parent=1 // pred_fallthru
      _
    // Predicated region
    $region10: #{tpu_custom_call.1} parent=1 // pred_check
      _
    $region11: #{tpu_custom_call.1} parent=1 // pred_check_branch
      %22 = sbr.rel (0) target = $region13
    $region12: #{tpu_custom_call.1} parent=1 // pred_region
      %23 = dma.done [#allocation3], 256
    $region13: #{tpu_custom_call.1} parent=1 // pred_fallthru
      _
    %v24 = vld [vmem:[#allocation2] sm:$0xff]
    %v25 = vld [vmem:[#allocation2 + $0x8] sm:$0xff]
    %v26 = vld [vmem:[%s0] sm:$0x3]
    %28 = vset.pattern.permute.xlu0 0
    %29 = vperm.xlu0 %28, %v26
    %v30 = vpop.permute.xlu0 %29
    %v32 = vunpack.c.l.s4 269488144
    %v33 = vunpack.c.0.s8 %v32
    %v34 = vlaneseq
    %v35 = vshrl.u32 %v34, 7
    %v36 = vsub.s32 %v33, %v35
    %v37 = vrot.slane %v30, %v36
    %v39 = vmul.f32 %v24, %v37
    %v40 = vmul.f32 %v25, %v37
    %41 = vst [vmem:[#allocation5] sm:$0xff] %v39
    %42 = vst [vmem:[#allocation5 + $0x8] sm:$0xff] %v40
    // Predicated region
    $region14: #{tpu_custom_call.1} parent=1 // pred_check
      _
    $region15: #{tpu_custom_call.1} parent=1 // pred_check_branch
      %44 = sbr.rel (0) target = $region17
    $region16: #{tpu_custom_call.1} parent=1 // pred_region
      %s46 = ssub.s32 256, 256
      %47 = vsyncadd [#allocation4], %s46
      %s49 = sshll.u32 [#allocation5], 4
      %s50 = int_to_ptr.vmem [resolvable:$true] %s49
      %52 = dma.vmem_to_hbm [thread:$0]  %s50, 256, %s2, [#allocation4]
    $region17: #{tpu_custom_call.1} parent=1 // pred_fallthru
      _
    // Predicated region
    $region18: #{tpu_custom_call.1} parent=1 // pred_check
      _
    $region19: #{tpu_custom_call.1} parent=1 // pred_check_branch
      %54 = sbr.rel (0) target = $region21
    $region20: #{tpu_custom_call.1} parent=1 // pred_region
      %55 = dma.done [#allocation4], 256
    $region21: #{tpu_custom_call.1} parent=1 // pred_fallthru
      _
    %56 = vsyncpa [#allocation3], 1
    %57 = vsyncpa [#allocation4], 1

</llo_original>
